<compile_context>
chip_gen: v6e
topology: v6e:2x2x1
jax: 0.10.0
libtpu: 0.0.40
codegen_flags: <defaults>
</compile_context>

<pallas_src>
import jax
import jax.numpy as jnp
from jax import lax
from jax.experimental import pallas as pl
from jax.experimental.pallas import tpu as pltpu


_VMEM_LIMIT_BYTES = 32 * 1024 * 1024   # safe on v5e/v6e/v7x


# ---------------------------------------------------------------------------
# helpers
# ---------------------------------------------------------------------------

def _round_up(x, m):
    return ((x + m - 1) // m) * m


def _largest_divisor_leq(n, cap):
    cap = max(1, min(n, cap))
    for d in range(cap, 0, -1):
        if n % d == 0:
            return d
    return 1


def _row_cap_1x1(c_in, c_out, w_pad, cbytes, budget=16 * 1024 * 1024):
    # rough per-row VMEM estimate: double-buffered x/add/out blocks + f32 temp
    per_row = w_pad * (2 * (c_in + 2 * c_out) * cbytes + 4 * c_out)
    return max(1, budget // per_row)


def _row_cap_3x3(c_in, c_out, w_pad, cbytes, budget=16 * 1024 * 1024):
    # rough per-row VMEM estimate: stacked/shifted operands + f32 partials + i/o
    per_row = w_pad * (8 * c_in * cbytes + 6 * c_out * 4)
    return max(1, budget // per_row)


# ---------------------------------------------------------------------------
# 1x1 lateral conv (+ optional fused top-down add)
# ---------------------------------------------------------------------------

def _make_conv1x1_kernel(w_pad, w_real, with_add):
    def kernel(x_ref, w_ref, b_ref, *rest):
        if with_add:
            add_ref, o_ref = rest
        else:
            (o_ref,) = rest
        x = x_ref[0]                                              # (C_in, TN)
        y = lax.dot_general(w_ref[...], x, (((1,), (0,)), ((), ())),
                            preferred_element_type=jnp.float32)   # (C_out, TN) f32
        y = y + b_ref[...]                                        # (C_out, 1) bias
        if with_add:
            y = y + add_ref[0].astype(jnp.float32)                # fused top-down add
        # Keep the W-pad columns at exactly zero so the 3x3 consumer can read its
        # +-1-column neighbours straight from the pad (no masking in its hot loop).
        col = lax.broadcasted_iota(jnp.int32, (1, y.shape[-1]), 1) % w_pad
        valid = jnp.logical_and(col >= 1, col <= w_real)
        y = jnp.where(valid, y, 0.0)
        o_ref[0] = y.astype(o_ref.dtype)
    return kernel


def conv1x1_pallas(x_flat, w, b, *, h, w_real, w_pad, add=None,
                   out_dtype, row_tile_cap=16):
    """1x1 conv (+ optional fused add) on the padded-row layout.

    x_flat: (B, C_in, H*W_pad) -> (B, C_out, H*W_pad).
    """
    batch, c_in, n = x_flat.shape
    c_out = w.shape[0]
    assert n == h * w_pad
    cbytes = jnp.dtype(x_flat.dtype).itemsize
    cap = min(row_tile_cap, _row_cap_1x1(c_in, c_out, w_pad, cbytes))
    tr = _largest_divisor_leq(h, cap)
    tn = tr * w_pad
    grid = (batch, h // tr)

    in_specs = [
        pl.BlockSpec((1, c_in, tn), lambda bi, ri: (bi, 0, ri)),
        pl.BlockSpec((c_out, c_in), lambda bi, ri: (0, 0)),
        pl.BlockSpec((c_out, 1), lambda bi, ri: (0, 0)),
    ]
    args = [x_flat, w, b.reshape(c_out, 1).astype(jnp.float32)]
    if add is not None:
        in_specs.append(pl.BlockSpec((1, c_out, tn), lambda bi, ri: (bi, 0, ri)))
        args.append(add)

    return pl.pallas_call(
        _make_conv1x1_kernel(w_pad, w_real, add is not None),
        out_shape=jax.ShapeDtypeStruct((batch, c_out, n), out_dtype),
        grid_spec=pltpu.PrefetchScalarGridSpec(
            num_scalar_prefetch=0,
            grid=grid,
            in_specs=in_specs,
            out_specs=pl.BlockSpec((1, c_out, tn), lambda bi, ri: (bi, 0, ri)),
        ),
        compiler_params=pltpu.CompilerParams(
            dimension_semantics=("parallel", "parallel"),
            vmem_limit_bytes=_VMEM_LIMIT_BYTES),
    )(*args)


# ---------------------------------------------------------------------------
# 3x3 "same" conv (padding=1): spatially tiled, 3 stacked-contraction matmuls
# ---------------------------------------------------------------------------

def _make_conv3x3_kernel(th, w_pad, c_in):
    n_t = th * w_pad            # output lanes per tile
    nb = (th + 2) * w_pad       # buffer lanes (tile + one halo row each side)

    def kernel(l_ref, halo_ref, wg_ref, b_ref, o_ref):
        main = l_ref[0]                              # (C_in, TH*W_pad)
        halo = halo_ref[0, 0]                        # (C_in, 2*W_pad)
        top = halo[:, :w_pad]                        # row above the tile (or zeros)
        bot = halo[:, w_pad:]                        # row below the tile (or zeros)
        zblk = jnp.zeros((c_in, w_pad), main.dtype)

        # Rows r0-1 .. r0+TH flattened on lanes, with a zero guard block on each
        # side so the +-1-lane shifted copies are plain static slices.
        xt2 = jnp.concatenate([zblk, top, main, bot, zblk], axis=1)  # (C,(TH+4)*Wp)

        # dw-stacked operand: two 1-lane shifted copies (reused by all three dh
        # taps) + the unshifted buffer -> contraction dim 3*C_in per matmul.
        xs = jnp.concatenate(
            [xt2[:, w_pad - 1:w_pad - 1 + nb],       # value at lane p = xt[p-1] (dw=-1)
             xt2[:, w_pad:w_pad + nb],               # xt[p]                      (dw= 0)
             xt2[:, w_pad + 1:w_pad + 1 + nb]],      # xt[p+1]                    (dw=+1)
            axis=0)                                  # (3*C_in, (TH+2)*W_pad)

        y = b_ref[...]                               # (C_out, 1), broadcasts below
        for g in range(3):                           # g = dh + 1; offsets are 128-aligned
            off = g * w_pad
            y = y + lax.dot_general(
                wg_ref[g], xs[:, off:off + n_t],
                (((1,), (0,)), ((), ())),
                preferred_element_type=jnp.float32)
        o_ref[0] = y.astype(o_ref.dtype)

    return kernel


def conv3x3_same_pallas(lat_flat, w, b, *, h, w_pad, out_dtype, compute_dtype,
                        row_tile_cap=16):
    """3x3 conv, stride 1, padding 1, on the padded-row layout.

    lat_flat: (B, C_in, H*W_pad) with zeroed pad columns -> (B, C_out, H*W_pad).
    """
    batch, c_in, n = lat_flat.shape
    c_out = w.shape[0]
    assert n == h * w_pad
    cbytes = jnp.dtype(compute_dtype).itemsize
    cap = min(row_tile_cap, _row_cap_3x3(c_in, c_out, w_pad, cbytes))
    th = _largest_divisor_leq(h, cap)
    n_tiles = h // th
    tn = th * w_pad

    # One-row halo above/below each tile (zeros at the image border) as a small
    # side operand, so the main input block stays a plain non-overlapping tile.
    l4 = lat_flat.reshape(batch, c_in, h, w_pad)
    zrow = jnp.zeros((batch, c_in, 1, w_pad), lat_flat.dtype)
    tops = jnp.concatenate([zrow, l4[:, :, th - 1:h - 1:th, :]], axis=2)  # (B,C,nT,Wp)
    bots = jnp.concatenate([l4[:, :, th::th, :], zrow], axis=2)           # (B,C,nT,Wp)
    halo = jnp.stack([tops, bots], axis=3)                                # (B,C,nT,2,Wp)
    halo = jnp.transpose(halo, (0, 2, 1, 3, 4)).reshape(batch, n_tiles, c_in, 2 * w_pad)

    # Weights as (kh, C_out, kw*C_in): one block per dh, dw stacked on the
    # contraction -> 3 MXU matmuls (contraction 3*C_in) instead of 9 small ones.
    wg = jnp.transpose(w, (2, 0, 3, 1)).reshape(3, c_out, 3 * c_in).astype(compute_dtype)
    b2 = b.reshape(c_out, 1).astype(jnp.float32)

    return pl.pallas_call(
        _make_conv3x3_kernel(th, w_pad, c_in),
        out_shape=jax.ShapeDtypeStruct((batch, c_out, n), out_dtype),
        grid_spec=pltpu.PrefetchScalarGridSpec(
            num_scalar_prefetch=0,
            grid=(batch, n_tiles),
            in_specs=[
                pl.BlockSpec((1, c_in, tn), lambda bi, ti: (bi, 0, ti)),
                pl.BlockSpec((1, 1, c_in, 2 * w_pad), lambda bi, ti: (bi, ti, 0, 0)),
                pl.BlockSpec((3, c_out, 3 * c_in), lambda bi, ti: (0, 0, 0)),
                pl.BlockSpec((c_out, 1), lambda bi, ti: (0, 0)),
            ],
            out_specs=pl.BlockSpec((1, c_out, tn), lambda bi, ti: (bi, 0, ti)),
        ),
        compiler_params=pltpu.CompilerParams(
            dimension_semantics=("parallel", "parallel"),
            vmem_limit_bytes=_VMEM_LIMIT_BYTES),
    )(lat_flat, halo, wg, b2)


# ---------------------------------------------------------------------------
# FPN forward
# ---------------------------------------------------------------------------

def fpn_forward_pallas(xs, lat_ws, lat_bs, fpn_ws, fpn_bs, *,
                       compute_dtype=jnp.float32):
    """FPN forward. xs: tuple of NCHW feature maps, finest (largest HxW) first."""
    n_levels = len(xs)
    shapes = [x.shape for x in xs]
    out_dtype = xs[0].dtype
    c_mid = lat_ws[0].shape[0]

    # Padded-row layout: data columns [1, W+1), zero pads, W_pad % 128 == 0.
    w_pads = [_round_up(s[3] + 2, 128) for s in shapes]

    def to_padded(x4, w_pad):
        b_, c_, h_, w_ = x4.shape
        xp = jnp.pad(x4, ((0, 0), (0, 0), (0, 0), (1, w_pad - w_ - 1)))
        return xp.reshape(b_, c_, h_ * w_pad)

    xpad = [to_padded(x.astype(compute_dtype), wp) for x, wp in zip(xs, w_pads)]
    lat_dtype = compute_dtype    # bf16 laterals in HBM when compute_dtype=bf16

    laterals = [None] * n_levels
    i = n_levels - 1
    laterals[i] = conv1x1_pallas(
        xpad[i], lat_ws[i].astype(compute_dtype), lat_bs[i],
        h=shapes[i][2], w_real=shapes[i][3], w_pad=w_pads[i], out_dtype=lat_dtype)

    # Top-down pathway: laterals[i-1] = conv1x1(x[i-1]) + nearest_up2(laterals[i]);
    # the add is fused into the lateral kernel.
    # TODO(synk): fuse the 2x nearest upsample itself into the lateral kernel's
    # add operand (read the coarse tile and expand in VMEM); the lane interleave
    # it needs has no clean documented Pallas op, so the repeat stays in XLA.
    for i in range(n_levels - 1, 0, -1):
        b_, _, hc, wc = shapes[i]
        hf, wf = shapes[i - 1][2], shapes[i - 1][3]
        # F.interpolate(scale_factor=2, mode='nearest') followed by `+=` requires
        # exact 2x spatial doubling, same as the PyTorch module.
        assert hf == 2 * hc and wf == 2 * wc, "FPN levels must be exactly 2x apart"
        coarse = laterals[i].reshape(b_, c_mid, hc, w_pads[i])[:, :, :, 1:1 + wc]
        up = jnp.repeat(jnp.repeat(coarse, 2, axis=2), 2, axis=3)
        up = to_padded(up, w_pads[i - 1])
        laterals[i - 1] = conv1x1_pallas(
            xpad[i - 1], lat_ws[i - 1].astype(compute_dtype), lat_bs[i - 1],
            h=hf, w_real=wf, w_pad=w_pads[i - 1], add=up, out_dtype=lat_dtype)

    # TODO(synk): the use_deform_conv=True branch (DeformConv2d + offset conv) is
    # not implemented; this covers the default plain 3x3 Conv2d path.
    # TODO(synk): the finest level's 3x3 could additionally be fused with its
    # lateral conv (no other consumer) to save one HBM round trip.
    outs = []
    for i in range(n_levels):
        b_, _, h_, w_ = shapes[i]
        y = conv3x3_same_pallas(
            laterals[i], fpn_ws[i], fpn_bs[i],
            h=h_, w_pad=w_pads[i], out_dtype=out_dtype, compute_dtype=compute_dtype)
        y = y.reshape(b_, c_mid, h_, w_pads[i])[:, :, :, 1:1 + w_]
        outs.append(y)
    return tuple(outs)


# ---------------------------------------------------------------------------
# Pure-JAX reference mirroring the PyTorch forward
# ---------------------------------------------------------------------------

def _conv1x1_ref(x, w, b):
    return jnp.einsum('oc,bchw->bohw', w, x) + b[None, :, None, None]


def _conv3x3_ref(x, w, b):
    y = lax.conv_general_dilated(
        x, w, window_strides=(1, 1), padding=((1, 1), (1, 1)),
        dimension_numbers=('NCHW', 'OIHW', 'NCHW'))
    return y + b[None, :, None, None]


def _upsample2_nearest_ref(x):
    return jnp.repeat(jnp.repeat(x, 2, axis=2), 2, axis=3)


def fpn_forward_ref(xs, lat_ws, lat_bs, fpn_ws, fpn_bs):
    n_levels = len(xs)
    laterals = [_conv1x1_ref(xs[i], lat_ws[i], lat_bs[i]) for i in range(n_levels)]
    for i in range(n_levels - 1, 0, -1):
        laterals[i - 1] = laterals[i - 1] + _upsample2_nearest_ref(laterals[i])
    return tuple(_conv3x3_ref(laterals[i], fpn_ws[i], fpn_bs[i])
                 for i in range(n_levels))


# ---------------------------------------------------------------------------
# self-test
# ---------------------------------------------------------------------------

if __name__ == "__main__":
    key = jax.random.PRNGKey(0)
    B = 2
    in_channels = [8, 16, 32]            # finest -> coarsest level
    out_channels = 16
    spatial = [(32, 32), (16, 16), (8, 8)]
    n_levels = len(in_channels)

    keys = jax.random.split(key, 5 * n_levels)
    # Integer-valued test data: every intermediate stays exactly representable in
    # both bf16 and f32, so both compute paths can be validated tightly.
    xs = tuple(
        jax.random.randint(keys[5 * i + 0],
                           (B, in_channels[i], spatial[i][0], spatial[i][1]),
                           -2, 3).astype(jnp.float32)
        for i in range(n_levels))
    lat_ws = [jax.random.randint(keys[5 * i + 1], (out_channels, in_channels[i]),
                                 -1, 2).astype(jnp.float32) for i in range(n_levels)]
    lat_bs = [jax.random.randint(keys[5 * i + 2], (out_channels,),
                                 -3, 4).astype(jnp.float32) for i in range(n_levels)]
    fpn_ws = [jax.random.randint(keys[5 * i + 3], (out_channels, out_channels, 3, 3),
                                 -1, 2).astype(jnp.float32) for i in range(n_levels)]
    fpn_bs = [jax.random.randint(keys[5 * i + 4], (out_channels,),
                                 -3, 4).astype(jnp.float32) for i in range(n_levels)]

    ref = fpn_forward_ref(xs, lat_ws, lat_bs, fpn_ws, fpn_bs)

    # f32 compute path
    outs = fpn_forward_pallas(xs, lat_ws, lat_bs, fpn_ws, fpn_bs,
                              compute_dtype=jnp.float32)
    outs = jax.block_until_ready(outs)
    for o, r, x in zip(outs, ref, xs):
        assert o.shape == (B, out_channels, x.shape[2], x.shape[3])
        assert o.dtype == jnp.float32
        assert jnp.allclose(o, r, atol=1e-3, rtol=1e-3), "f32 path mismatch vs reference"

    # bf16-operand / f32-accumulation compute path (bf16 MXU, bf16 laterals in HBM)
    outs_bf16 = fpn_forward_pallas(xs, lat_ws, lat_bs, fpn_ws, fpn_bs,
                                   compute_dtype=jnp.bfloat16)
    outs_bf16 = jax.block_until_ready(outs_bf16)
    for o, r in zip(outs_bf16, ref):
        assert jnp.allclose(o, r, atol=1e-2, rtol=1e-2), "bf16 path mismatch vs reference"

    print("KERNEL_OK")
</pallas_src>

<mosaic_0001>
module attributes {stable_mosaic.version = 11 : i64} {
  func.func @kernel(%arg0: i32, %arg1: i32, %arg2: memref<1x32x1024xf32, #tpu.memory_space<vmem>>, %arg3: memref<16x32xf32, #tpu.memory_space<vmem>>, %arg4: memref<16x1xf32, #tpu.memory_space<vmem>>, %arg5: memref<1x16x1024xf32, #tpu.memory_space<vmem>>) attributes {dimension_semantics = [#tpu.dimension_semantics<parallel>, #tpu.dimension_semantics<parallel>], iteration_bounds = array<i64: 2, 1>, scalar_prefetch = 0 : i64, scratch_operands = 0 : i64, tpu.core_type = #tpu.core_type<tc>, window_params = [{transform_indices = @transform_0, window_bounds = array<i64: 1, 32, 1024>}, {pipeline_mode = #tpu.pipeline_mode<synchronous>, transform_indices = @transform_1, window_bounds = array<i64: 16, 32>}, {pipeline_mode = #tpu.pipeline_mode<synchronous>, transform_indices = @transform_2, window_bounds = array<i64: 16, 1>}, {transform_indices = @transform_3, window_bounds = array<i64: 1, 16, 1024>}]} {
    %c0 = arith.constant 0 : index
    %c0_0 = arith.constant 0 : index
    %c0_1 = arith.constant 0 : index
    %0 = vector.load %arg2[%c0, %c0_0, %c0_1] : memref<1x32x1024xf32, #tpu.memory_space<vmem>>, vector<1x32x1024xf32>
    %1 = vector.shape_cast %0 : vector<1x32x1024xf32> to vector<32x1024xf32>
    %c0_2 = arith.constant 0 : index
    %c0_3 = arith.constant 0 : index
    %2 = vector.load %arg3[%c0_2, %c0_3] : memref<16x32xf32, #tpu.memory_space<vmem>>, vector<16x32xf32>
    %cst = arith.constant dense<0.000000e+00> : vector<16x1024xf32>
    %3 = tpu.matmul %2, %1, %cst {dimension_numbers = #tpu.dot_dimension_numbers<[1], [0], [0], [1], [0, 0, 1, 1], [], []>} : vector<16x32xf32>, vector<32x1024xf32>, vector<16x1024xf32> -> vector<16x1024xf32>
    %c0_4 = arith.constant 0 : index
    %c0_5 = arith.constant 0 : index
    %4 = vector.load %arg4[%c0_4, %c0_5] : memref<16x1xf32, #tpu.memory_space<vmem>>, vector<16x1xf32>
    %5 = vector.broadcast %4 : vector<16x1xf32> to vector<16x1024xf32>
    %6 = arith.addf %3, %5 : vector<16x1024xf32>
    %7 = tpu.iota {dimensions = array<i32: 1>} : vector<1x1024xi32>
    %c128_i32 = arith.constant 128 : i32
    %c0_i32 = arith.constant 0 : i32
    %8 = arith.cmpi eq, %c128_i32, %c0_i32 : i32
    %c1_i32 = arith.constant 1 : i32
    %9 = arith.select %8, %c1_i32, %c128_i32 : i32
    %10 = vector.broadcast %9 : i32 to vector<1x1024xi32>
    %11 = arith.remsi %7, %10 : vector<1x1024xi32>
    %c0_i32_6 = arith.constant 0 : i32
    %12 = vector.broadcast %c0_i32_6 : i32 to vector<1x1024xi32>
    %13 = arith.cmpi ne, %11, %12 : vector<1x1024xi32>
    %c0_i32_7 = arith.constant 0 : i32
    %14 = vector.broadcast %c0_i32_7 : i32 to vector<1x1024xi32>
    %15 = arith.cmpi slt, %11, %14 : vector<1x1024xi32>
    %c0_i32_8 = arith.constant 0 : i32
    %16 = arith.cmpi slt, %9, %c0_i32_8 : i32
    %17 = vector.broadcast %16 : i1 to vector<1x1024xi1>
    %18 = vector.broadcast %17 : vector<1x1024xi1> to vector<1x1024xi1>
    %19 = arith.xori %15, %18 : vector<1x1024xi1>
    %20 = arith.andi %19, %13 : vector<1x1024xi1>
    %21 = vector.broadcast %9 : i32 to vector<1x1024xi32>
    %22 = arith.addi %11, %21 : vector<1x1024xi32>
    %23 = arith.select %20, %22, %11 : vector<1x1024xi1>, vector<1x1024xi32>
    %c1_i32_9 = arith.constant 1 : i32
    %24 = vector.broadcast %c1_i32_9 : i32 to vector<1x1024xi32>
    %25 = arith.cmpi sge, %23, %24 : vector<1x1024xi32>
    %c8_i32 = arith.constant 8 : i32
    %26 = vector.broadcast %c8_i32 : i32 to vector<1x1024xi32>
    %27 = arith.cmpi sle, %23, %26 : vector<1x1024xi32>
    %28 = arith.andi %25, %27 : vector<1x1024xi1>
    %cst_10 = arith.constant 0.000000e+00 : f32
    %29 = vector.shape_cast %28 : vector<1x1024xi1> to vector<1x1024xi1>
    %30 = vector.broadcast %29 : vector<1x1024xi1> to vector<16x1024xi1>
    %31 = vector.broadcast %cst_10 : f32 to vector<16x1024xf32>
    %32 = arith.select %30, %6, %31 : vector<16x1024xi1>, vector<16x1024xf32>
    %c0_11 = arith.constant 0 : index
    %c0_12 = arith.constant 0 : index
    %c0_13 = arith.constant 0 : index
    %33 = vector.load %arg5[%c0_11, %c0_12, %c0_13] : memref<1x16x1024xf32, #tpu.memory_space<vmem>>, vector<1x16x1024xf32>
    %34 = vector.shape_cast %33 : vector<1x16x1024xf32> to vector<16x1024xf32>
    %35 = vector.shape_cast %32 : vector<16x1024xf32> to vector<1x16x1024xf32>
    tpu.vector_store %arg5[%c0_11, %c0_12, %c0_13], %35 {strides = array<i32>} : memref<1x16x1024xf32, #tpu.memory_space<vmem>>, vector<1x16x1024xf32>,
    return
  }
  func.func @transform_0(%arg0: i32, %arg1: i32) -> (i32, i32, i32) {
    %c0_i32 = arith.constant 0 : i32
    %c0_i32_0 = arith.constant 0 : i32
    return %arg0, %c0_i32, %arg1 : i32, i32, i32
  }
  func.func @transform_1(%arg0: i32, %arg1: i32) -> (i32, i32) {
    %c0_i32 = arith.constant 0 : i32
    %c0_i32_0 = arith.constant 0 : i32
    %c0_i32_1 = arith.constant 0 : i32
    return %c0_i32, %c0_i32_0 : i32, i32
  }
  func.func @transform_2(%arg0: i32, %arg1: i32) -> (i32, i32) {
    %c0_i32 = arith.constant 0 : i32
    %c0_i32_0 = arith.constant 0 : i32
    %c0_i32_1 = arith.constant 0 : i32
    return %c0_i32, %c0_i32_0 : i32, i32
  }
  func.func @transform_3(%arg0: i32, %arg1: i32) -> (i32, i32, i32) {
    %c0_i32 = arith.constant 0 : i32
    %c0_i32_0 = arith.constant 0 : i32
    return %arg0, %c0_i32, %arg1 : i32, i32, i32
  }
}

</mosaic_0001>

<llo_original>
// kernel: tpu_custom_call.1
$region0: #{tpu_custom_call.1}
  #allocation0 [shape = 'u32[]', space=smem, size = 0x4, offset = 0x4, fixed_abs, tag = 'smem constant byte address 0x4 - core index']
  #allocation1 [shape = 'u32[144,128]{1,0:T(1,128)}', space=vmem, size = 0x12000, scoped, tag = 'internal scratch']
  %s0 = inlined_call_operand.hbm [shape: f32[2,32,1024], index: 0, kind: input, shape index: {}]
  %s1 = inlined_call_operand.vmem [shape: f32[16,32], index: 1, kind: input, shape index: {}]
  %s2 = inlined_call_operand.vmem [shape: f32[16,1], index: 2, kind: input, shape index: {}]
  %s3 = inlined_call_operand.hbm [shape: f32[2,16,1024], index: 3, kind: output, shape index: {}]
  %s4 = sld [smem:[#allocation0]]
  $region49: #{tpu_custom_call.1} parent=0
    _
  %s6 = ssub.s32 1, %s4
  %s7 = scalar_select 0, %s6, %s4
  $region1: #{tpu_custom_call.1} parent=0
    #allocation2 [shape = 'u8[262144]{0}', space=vmem, size = 0x40000, scoped, tag = 'input window, operand 0']
    #allocation3 [shape = 's32[2]{0}', space=sflag, size = 0x8, scoped, tag = 'scoped memory for tpu_custom_call.1']
    #allocation4 [shape = 's32[2]{0}', space=sflag, size = 0x8, scoped, tag = 'scoped memory for tpu_custom_call.1']
    #allocation5 [shape = 'u8[131072]{0}', space=vmem, size = 0x20000, scoped, tag = 'output window, operand 0']
    %8 = vsyncpa [#allocation3], 0
    %s9 = scalar_lea.sflag [#allocation3], 1
    %10 = vsyncpa %s9, 0
    %11 = vsyncpa [#allocation4], 0
    %s12 = scalar_lea.sflag [#allocation4], 1
    %13 = vsyncpa %s12, 0
    loop: start=0, step=1, limit=4
    $region2: #{tpu_custom_call.1} parent=1 // loop_pre_header
      _
    $region3: #{tpu_custom_call.1} parent=1 // loop_header
      %s15 = sphi 0, %s19
      %p16 = scmp.ge.s32.totalorder %s15, 4
      %s22 = sphi 0, %s34
      %s23 = sphi 0, %s30
      %s24 = sphi 0, %s22
      %s25 = sphi 0, %s23
      %s26 = sphi 0, %s24
      %s27 = sphi 0, %s25
      %s39 = sphi 0, %s41
      %s42 = sphi 0, %s39
      %s43 = sphi 0, %s42
      %s59 = sphi 0, %s43
      %s63 = sphi 0, %s63
      %s65 = sphi 0, %s63
      %s66 = sphi 0, %s65
      %s80 = sphi 0, %s66
      %s84 = sphi 0, %s84
      %s86 = sphi 0, %s84
      %s87 = sphi 0, %s86
      %s101 = sphi 0, %s87
      %s109 = sphi 0, %s111
      %s112 = sphi 0, %s109
      %s113 = sphi 0, %s112
      %s129 = sphi 0, %s113
    $region4: #{tpu_custom_call.1} parent=1 // loop_header_branch
      %18 = sbr.rel (%p16) target = $region8
    $region5: #{tpu_custom_call.1} parent=1 // loop_body
      %s20 = ssub.s32 %s15, 1
      %s21 = ssub.s32 %s15, 2
      %s28 = sadd.s32 1, %s23
      %p29 = scmp.ge.s32.totalorder %s28, 1
      %s30 = scalar_select %p29, 0, %s28
      %s31 = sadd.s32 1, %s22
      %s32 = scalar_select %p29, %s31, %s22
      %p33 = scmp.ge.s32.totalorder %s32, 2
      %s34 = scalar_select %p33, 0, %s32
      %s35 = ssub.s32 %s22, %s34
      %s36 = ssub.s32 %s23, %s30
      %s37 = sor.u32 %s35, %s36
      %p38 = scmp.eq.s32.totalorder %s37, 0
      %s40 = sadd.s32 %s39, 1
      %s41 = scalar_select %p38, %s39, %s40
      %p44 = pneg %p38
      %p45 = scmp.eq.s32.totalorder %s15, 1
      %p46 = por %p44, %p45
      %p47 = scmp.ne.s32.totalorder %s39, %s42
      %p48 = scmp.eq.s32.totalorder %s15, 0
      %p49 = por %p47, %p48
      %p50 = scmp.ne.s32.totalorder %s39, %s42
      %p51 = scmp.eq.s32.totalorder %s20, 1
      %p52 = por %p50, %p51
      %p53 = scmp.ne.s32.totalorder %s42, %s43
      %p54 = scmp.eq.s32.totalorder %s20, 0
      %p55 = por %p53, %p54
      %p56 = scmp.ne.s32.totalorder %s42, %s43
      %p57 = scmp.eq.s32.totalorder %s21, 1
      %p58 = por %p56, %p57
      %p60 = scmp.ne.s32.totalorder %s43, %s59
      %p61 = scmp.eq.s32.totalorder %s21, 0
      %p62 = por %p60, %p61
      %s64 = sadd.s32 %s63, 1
      %p67 = scmp.eq.s32.totalorder %s15, 1
      %p68 = scmp.ne.s32.totalorder %s63, %s65
      %p69 = scmp.eq.s32.totalorder %s15, 0
      %p70 = por %p68, %p69
      %p71 = scmp.ne.s32.totalorder %s63, %s65
      %p72 = scmp.eq.s32.totalorder %s20, 1
      %p73 = por %p71, %p72
      %p74 = scmp.ne.s32.totalorder %s65, %s66
      %p75 = scmp.eq.s32.totalorder %s20, 0
      %p76 = por %p74, %p75
      %p77 = scmp.ne.s32.totalorder %s65, %s66
      %p78 = scmp.eq.s32.totalorder %s21, 1
      %p79 = por %p77, %p78
      %p81 = scmp.ne.s32.totalorder %s66, %s80
      %p82 = scmp.eq.s32.totalorder %s21, 0
      %p83 = por %p81, %p82
      %s85 = sadd.s32 %s84, 1
      %p88 = scmp.eq.s32.totalorder %s15, 1
      %p89 = scmp.ne.s32.totalorder %s84, %s86
      %p90 = scmp.eq.s32.totalorder %s15, 0
      %p91 = por %p89, %p90
      %p92 = scmp.ne.s32.totalorder %s84, %s86
      %p93 = scmp.eq.s32.totalorder %s20, 1
      %p94 = por %p92, %p93
      %p95 = scmp.ne.s32.totalorder %s86, %s87
      %p96 = scmp.eq.s32.totalorder %s20, 0
      %p97 = por %p95, %p96
      %p98 = scmp.ne.s32.totalorder %s86, %s87
      %p99 = scmp.eq.s32.totalorder %s21, 1
      %p100 = por %p98, %p99
      %p102 = scmp.ne.s32.totalorder %s87, %s101
      %p103 = scmp.eq.s32.totalorder %s21, 0
      %p104 = por %p102, %p103
      %s105 = ssub.s32 %s22, %s34
      %s106 = ssub.s32 %s23, %s30
      %s107 = sor.u32 %s105, %s106
      %p108 = scmp.eq.s32.totalorder %s107, 0
      %s110 = sadd.s32 %s109, 1
      %s111 = scalar_select %p108, %s109, %s110
      %p114 = pneg %p108
      %p115 = scmp.eq.s32.totalorder %s15, 1
      %p116 = por %p114, %p115
      %p117 = scmp.ne.s32.totalorder %s109, %s112
      %p118 = scmp.eq.s32.totalorder %s15, 0
      %p119 = por %p117, %p118
      %p120 = scmp.ne.s32.totalorder %s109, %s112
      %p121 = scmp.eq.s32.totalorder %s20, 1
      %p122 = por %p120, %p121
      %p123 = scmp.ne.s32.totalorder %s112, %s113
      %p124 = scmp.eq.s32.totalorder %s20, 0
      %p125 = por %p123, %p124
      %p126 = scmp.ne.s32.totalorder %s112, %s113
      %p127 = scmp.eq.s32.totalorder %s21, 1
      %p128 = por %p126, %p127
      %p130 = scmp.ne.s32.totalorder %s113, %s129
      %p131 = scmp.eq.s32.totalorder %s21, 0
      %p132 = por %p130, %p131
      %p133 = scmp.le.s32.totalorder 1, %s15
      %p134 = scmp.lt.s32.totalorder %s15, 3
      %p135 = pnand %p133, %p134
      %p136 = pneg %p135
      // Predicated region
      $region9: #{tpu_custom_call.1} parent=5 // pred_check
        _
      $region10: #{tpu_custom_call.1} parent=5 // pred_check_branch
        %138 = sbr.rel (%p135) target = $region12
      $region11: #{tpu_custom_call.1} parent=5 // pred_region
        %s139 = ssub.s32 %s15, 1
        // Predicated region
        $region13: #{tpu_custom_call.1} parent=11 // pred_check
          %p140 = pneg %p76
        $region14: #{tpu_custom_call.1} parent=11 // pred_check_branch
          %142 = sbr.rel (%p140) target = $region16
        $region15: #{tpu_custom_call.1} parent=11 // pred_region
          _
        $region16: #{tpu_custom_call.1} parent=11 // pred_fallthru
          _
        // Predicated region
        $region17: #{tpu_custom_call.1} parent=11 // pred_check
          %p143 = pneg %p97
        $region18: #{tpu_custom_call.1} parent=11 // pred_check_branch
          %145 = sbr.rel (%p143) target = $region20
        $region19: #{tpu_custom_call.1} parent=11 // pred_region
          _
        $region20: #{tpu_custom_call.1} parent=11 // pred_fallthru
          _
      $region12: #{tpu_custom_call.1} parent=5 // pred_fallthru
        _
      %p146 = scmp.lt.s32.totalorder %s15, 2
      // Predicated region
      $region21: #{tpu_custom_call.1} parent=5 // pred_check
        %p147 = pneg %p146
      $region22: #{tpu_custom_call.1} parent=5 // pred_check_branch
        %149 = sbr.rel (%p147) target = $region24
      $region23: #{tpu_custom_call.1} parent=5 // pred_region
        // Predicated region
        $region25: #{tpu_custom_call.1} parent=23 // pred_check
          %p150 = pneg %p49
        $region26: #{tpu_custom_call.1} parent=23 // pred_check_branch
          %152 = sbr.rel (%p150) target = $region28
        $region27: #{tpu_custom_call.1} parent=23 // pred_region
          %s153 = sand.u32 %s39, 1
          %s154 = scalar_lea.sflag [#allocation3], %s153
          %s155 = sand.u32 %s39, 1
          %s156 = smul.addr %s155, 256
          %s157 = scalar_lea.vmem [#allocation2], %s156
          %s158 = smul.u32 8, %s23
          %s160 = ssub.s32 4096, 4096
          %161 = vsyncadd %s154, %s160
          %s162 = smul.addr %s22, 32
          %s163 = sadd.s32 %s158, %s162
          %s164 = smul.addr %s163, 128
          %s165 = scalar_lea.hbm %s0, %s164
          %s166 = sshll.u32 %s157, 4
          %s167 = int_to_ptr.vmem [resolvable:$true] %s166
          %172 = dma.hbm_to_vmem [thread:$0]  %s165, 4096, %s167, %s154, 1024, 1024, 64
        $region28: #{tpu_custom_call.1} parent=23 // pred_fallthru
          _
      $region24: #{tpu_custom_call.1} parent=5 // pred_fallthru
        _
      %p173 = scmp.le.s32.totalorder 1, %s15
      %p174 = scmp.lt.s32.totalorder %s15, 3
      %p175 = pnand %p173, %p174
      %p176 = pneg %p175
      // Predicated region
      $region29: #{tpu_custom_call.1} parent=5 // pred_check
        _
      $region30: #{tpu_custom_call.1} parent=5 // pred_check_branch
        %178 = sbr.rel (%p175) target = $region32
      $region31: #{tpu_custom_call.1} parent=5 // pred_region
        %s179 = ssub.s32 %s15, 1
        %s180 = sand.u32 %s42, 1
        %s181 = scalar_lea.sflag [#allocation3], %s180
        %s182 = sand.u32 %s42, 1
        %s183 = smul.addr %s182, 256
        %s184 = scalar_lea.vmem [#allocation2], %s183
        // Predicated region
        $region33: #{tpu_custom_call.1} parent=31 // pred_check
          %p185 = pneg %p55
        $region34: #{tpu_custom_call.1} parent=31 // pred_check_branch
          %187 = sbr.rel (%p185) target = $region36
        $region35: #{tpu_custom_call.1} parent=31 // pred_region
          %188 = dma.done %s181, 4096
        $region36: #{tpu_custom_call.1} parent=31 // pred_fallthru
          _
        %s189 = sand.u32 %s42, 1
        %s190 = scalar_lea.sflag [#allocation3], %s189
        %s191 = sand.u32 %s42, 1
        %s192 = smul.addr %s191, 256
        %s193 = scalar_lea.vmem [#allocation2], %s192
        %p194 = pneg %p55
        %p195 = pneg %p52
        %p196 = pneg %p76
        %p197 = pneg %p73
        %p198 = pneg %p97
        %p199 = pneg %p94
        %p200 = pneg %p125
        %p201 = pneg %p122
        %s202 = sand.u32 %s112, 1
        %s203 = scalar_lea.sflag [#allocation4], %s202
        %s204 = sand.u32 %s112, 1
        %s205 = smul.addr %s204, 128
        %s206 = scalar_lea.vmem [#allocation5], %s205
        %s207 = smul.u32 8, %s25
        %s208 = smul.u32 8, %s25
        %v209 = vld [vmem:[%s184] sm:$0xff]
        %v210 = vld [vmem:[%s184 + $0x8] sm:$0xff]
        %v211 = vld [vmem:[%s184 + $0x10] sm:$0xff]
        %v212 = vld [vmem:[%s184 + $0x18] sm:$0xff]
        %v213 = vld [vmem:[%s184 + $0x20] sm:$0xff]
        %v214 = vld [vmem:[%s184 + $0x28] sm:$0xff]
        %v215 = vld [vmem:[%s184 + $0x30] sm:$0xff]
        %v216 = vld [vmem:[%s184 + $0x38] sm:$0xff]
        %v217 = vld [vmem:[%s184 + $0x40] sm:$0xff]
        %v218 = vld [vmem:[%s184 + $0x48] sm:$0xff]
        %v219 = vld [vmem:[%s184 + $0x50] sm:$0xff]
        %v220 = vld [vmem:[%s184 + $0x58] sm:$0xff]
        %v221 = vld [vmem:[%s184 + $0x60] sm:$0xff]
        %v222 = vld [vmem:[%s184 + $0x68] sm:$0xff]
        %v223 = vld [vmem:[%s184 + $0x70] sm:$0xff]
        %v224 = vld [vmem:[%s184 + $0x78] sm:$0xff]
        %v225 = vld [vmem:[%s184 + $0x80] sm:$0xff]
        %v226 = vld [vmem:[%s184 + $0x88] sm:$0xff]
        %v227 = vld [vmem:[%s184 + $0x90] sm:$0xff]
        %v228 = vld [vmem:[%s184 + $0x98] sm:$0xff]
        %v229 = vld [vmem:[%s184 + $0xa0] sm:$0xff]
        %v230 = vld [vmem:[%s184 + $0xa8] sm:$0xff]
        %v231 = vld [vmem:[%s184 + $0xb0] sm:$0xff]
        %v232 = vld [vmem:[%s184 + $0xb8] sm:$0xff]
        %v233 = vld [vmem:[%s184 + $0xc0] sm:$0xff]
        %v234 = vld [vmem:[%s184 + $0xc8] sm:$0xff]
        %v235 = vld [vmem:[%s184 + $0xd0] sm:$0xff]
        %v236 = vld [vmem:[%s184 + $0xd8] sm:$0xff]
        %v237 = vld [vmem:[%s184 + $0xe0] sm:$0xff]
        %v238 = vld [vmem:[%s184 + $0xe8] sm:$0xff]
        %v239 = vld [vmem:[%s184 + $0xf0] sm:$0xff]
        %v240 = vld [vmem:[%s184 + $0xf8] sm:$0xff]
        %v241 = vld [vmem:[%s1] sm:$0xff]
        %v242 = vld [vmem:[%s1 + $0x8] sm:$0xff]
        %v243 = vld [vmem:[%s2] sm:$0xff]
        %v244 = vld [vmem:[%s2 + $0x8] sm:$0xff]
        %246 = vset.pattern.permute.xlu0 0
        %247 = vperm.xlu0 %246, %v243
        %v248 = vpop.permute.xlu0 %247
        %251 = vset.pattern.permute.xlu0 0
        %252 = vperm.xlu0 %251, %v244
        %v253 = vpop.permute.xlu0 %252
        %vm255 = vcmask 261120
        %v257 = vsel %vm255, %v241, 0
        %v260 = vsel %vm255, %v242, 0
        %262 = vmatprep.subr.mxu0 0.0
        %263 = vmatpush1.msra.mxu0 0.0
        %264 = vmatprep.subr.mxu0 0.0
        %265 = vmatpush1.msra.mxu0 0.0
        %266 = vmatprep.subr.mxu0 0.0
        %267 = vmatpush1.msra.mxu0 0.0
        %268 = vmatprep.subr.mxu0 0.0
        %269 = vmatpush1.msra.mxu0 0.0
        %270 = vmatprep.subr.mxu0 0.0
        %271 = vmatpush1.msra.mxu0 0.0
        %272 = vmatprep.subr.mxu0 0.0
        %273 = vmatpush1.msra.mxu0 0.0
        %274 = vmatprep.subr.mxu0 0.0
        %275 = vmatpush1.msra.mxu0 0.0
        %276 = vmatprep.subr.mxu0 0.0
        %277 = vmatpush1.msra.mxu0 0.0
        %278 = vmatprep.subr.mxu0 0.0
        %279 = vmatpush1.msra.mxu0 0.0
        %280 = vmatprep.subr.mxu0 0.0
        %281 = vmatpush1.msra.mxu0 0.0
        %282 = vmatprep.subr.mxu0 0.0
        %283 = vmatpush1.msra.mxu0 0.0
        %284 = vmatprep.subr.mxu0 0.0
        %285 = vmatpush1.msra.mxu0 0.0
        %286 = vmatprep.subr.mxu0 %v234
        %287 = vmatpush1.msra.mxu0 %v233
        %288 = vmatprep.subr.mxu0 %v226
        %289 = vmatpush1.msra.mxu0 %v225
        %290 = vmatprep.subr.mxu0 %v218
        %291 = vmatpush1.msra.mxu0 %v217
        %292 = vmatprep.subr.mxu0 %v210
        %293 = vmatpush1.msra.mxu0 %v209
        %294 = vmatprep.subr.mxu0 0.0
        %295 = vmatpush2.msra.mxu0 0.0
        %296 = vmatprep.subr.mxu0 0.0
        %297 = vmatpush2.msra.mxu0 0.0
        %298 = vmatprep.subr.mxu0 0.0
        %299 = vmatpush2.msra.mxu0 0.0
        %300 = vmatprep.subr.mxu0 0.0
        %301 = vmatpush2.msra.mxu0 0.0
        %302 = vmatprep.subr.mxu0 0.0
        %303 = vmatpush2.msra.mxu0 0.0
        %304 = vmatprep.subr.mxu0 0.0
        %305 = vmatpush2.msra.mxu0 0.0
        %306 = vmatprep.subr.mxu0 0.0
        %307 = vmatpush2.msra.mxu0 0.0
        %308 = vmatprep.subr.mxu0 0.0
        %309 = vmatpush2.msra.mxu0 0.0
        %310 = vmatprep.subr.mxu0 0.0
        %311 = vmatpush2.msra.mxu0 0.0
        %312 = vmatprep.subr.mxu0 0.0
        %313 = vmatpush2.msra.mxu0 0.0
        %314 = vmatprep.subr.mxu0 0.0
        %315 = vmatpush2.msra.mxu0 0.0
        %316 = vmatprep.subr.mxu0 0.0
        %317 = vmatpush2.msra.mxu0 0.0
        %318 = vmatprep.subr.mxu0 0.0
        %319 = vmatpush2.msra.mxu0 0.0
        %320 = vmatprep.subr.mxu0 0.0
        %321 = vmatpush2.msra.mxu0 0.0
        %322 = vmatprep.subr.mxu0 0.0
        %323 = vmatpush2.msra.mxu0 0.0
        %324 = vmatprep.subr.mxu0 0.0
        %325 = vmatpush2.msra.mxu0 0.0
        %326 = vmatprep.mubr.f32.mxu0 0.0
        %327 = vmatmul.mubr.f32.gmra.mxu0 %v257
        %v328 = vpop.f32.mrf.mxu0
        %v329 = vadd.f32 %v248, %v328
        %v330 = vpop.f32.mrf.mxu0
        %v331 = vadd.f32 %v248, %v330
        %332 = vmatprep.mubr.f32.mxu0 0.0
        %333 = vmatmul.mubr.f32.gmra.mxu0 %v260
        %v334 = vpop.f32.mrf.mxu0
        %v335 = vadd.f32 %v253, %v334
        %v336 = vpop.f32.mrf.mxu0
        %v337 = vadd.f32 %v253, %v336
        %338 = vdwg.mxu0
        %339 = vmatprep.subr.mxu0 0.0
        %340 = vmatpush1.msra.mxu0 0.0
        %341 = vmatprep.subr.mxu0 0.0
        %342 = vmatpush1.msra.mxu0 0.0
        %343 = vmatprep.subr.mxu0 0.0
        %344 = vmatpush1.msra.mxu0 0.0
        %345 = vmatprep.subr.mxu0 0.0
        %346 = vmatpush1.msra.mxu0 0.0
        %347 = vmatprep.subr.mxu0 0.0
        %348 = vmatpush1.msra.mxu0 0.0
        %349 = vmatprep.subr.mxu0 0.0
        %350 = vmatpush1.msra.mxu0 0.0
        %351 = vmatprep.subr.mxu0 0.0
        %352 = vmatpush1.msra.mxu0 0.0
        %353 = vmatprep.subr.mxu0 0.0
        %354 = vmatpush1.msra.mxu0 0.0
        %355 = vmatprep.subr.mxu0 0.0
        %356 = vmatpush1.msra.mxu0 0.0
        %357 = vmatprep.subr.mxu0 0.0
        %358 = vmatpush1.msra.mxu0 0.0
        %359 = vmatprep.subr.mxu0 0.0
        %360 = vmatpush1.msra.mxu0 0.0
        %361 = vmatprep.subr.mxu0 0.0
        %362 = vmatpush1.msra.mxu0 0.0
        %363 = vmatprep.subr.mxu0 %v236
        %364 = vmatpush1.msra.mxu0 %v235
        %365 = vmatprep.subr.mxu0 %v228
        %366 = vmatpush1.msra.mxu0 %v227
        %367 = vmatprep.subr.mxu0 %v220
        %368 = vmatpush1.msra.mxu0 %v219
        %369 = vmatprep.subr.mxu0 %v212
        %370 = vmatpush1.msra.mxu0 %v211
        %371 = vmatprep.subr.mxu0 0.0
        %372 = vmatpush2.msra.mxu0 0.0
        %373 = vmatprep.subr.mxu0 0.0
        %374 = vmatpush2.msra.mxu0 0.0
        %375 = vmatprep.subr.mxu0 0.0
        %376 = vmatpush2.msra.mxu0 0.0
        %377 = vmatprep.subr.mxu0 0.0
        %378 = vmatpush2.msra.mxu0 0.0
        %379 = vmatprep.subr.mxu0 0.0
        %380 = vmatpush2.msra.mxu0 0.0
        %381 = vmatprep.subr.mxu0 0.0
        %382 = vmatpush2.msra.mxu0 0.0
        %383 = vmatprep.subr.mxu0 0.0
        %384 = vmatpush2.msra.mxu0 0.0
        %385 = vmatprep.subr.mxu0 0.0
        %386 = vmatpush2.msra.mxu0 0.0
        %387 = vmatprep.subr.mxu0 0.0
        %388 = vmatpush2.msra.mxu0 0.0
        %389 = vmatprep.subr.mxu0 0.0
        %390 = vmatpush2.msra.mxu0 0.0
        %391 = vmatprep.subr.mxu0 0.0
        %392 = vmatpush2.msra.mxu0 0.0
        %393 = vmatprep.subr.mxu0 0.0
        %394 = vmatpush2.msra.mxu0 0.0
        %395 = vmatprep.subr.mxu0 0.0
        %396 = vmatpush2.msra.mxu0 0.0
        %397 = vmatprep.subr.mxu0 0.0
        %398 = vmatpush2.msra.mxu0 0.0
        %399 = vmatprep.subr.mxu0 0.0
        %400 = vmatpush2.msra.mxu0 0.0
        %401 = vmatprep.subr.mxu0 0.0
        %402 = vmatpush2.msra.mxu0 0.0
        %403 = vmatprep.mubr.f32.mxu0 0.0
        %404 = vmatmul.mubr.f32.gmra.mxu0 %v257
        %v405 = vpop.f32.mrf.mxu0
        %v406 = vadd.f32 %v248, %v405
        %v407 = vpop.f32.mrf.mxu0
        %v408 = vadd.f32 %v248, %v407
        %409 = vmatprep.mubr.f32.mxu0 0.0
        %410 = vmatmul.mubr.f32.gmra.mxu0 %v260
        %v411 = vpop.f32.mrf.mxu0
        %v412 = vadd.f32 %v253, %v411
        %v413 = vpop.f32.mrf.mxu0
        %v414 = vadd.f32 %v253, %v413
        %415 = vdwg.mxu0
        %416 = vmatprep.subr.mxu0 0.0
        %417 = vmatpush1.msra.mxu0 0.0
        %418 = vmatprep.subr.mxu0 0.0
        %419 = vmatpush1.msra.mxu0 0.0
        %420 = vmatprep.subr.mxu0 0.0
        %421 = vmatpush1.msra.mxu0 0.0
        %422 = vmatprep.subr.mxu0 0.0
        %423 = vmatpush1.msra.mxu0 0.0
        %424 = vmatprep.subr.mxu0 0.0
        %425 = vmatpush1.msra.mxu0 0.0
        %426 = vmatprep.subr.mxu0 0.0
        %427 = vmatpush1.msra.mxu0 0.0
        %428 = vmatprep.subr.mxu0 0.0
        %429 = vmatpush1.msra.mxu0 0.0
        %430 = vmatprep.subr.mxu0 0.0
        %431 = vmatpush1.msra.mxu0 0.0
        %432 = vmatprep.subr.mxu0 0.0
        %433 = vmatpush1.msra.mxu0 0.0
        %434 = vmatprep.subr.mxu0 0.0
        %435 = vmatpush1.msra.mxu0 0.0
        %436 = vmatprep.subr.mxu0 0.0
        %437 = vmatpush1.msra.mxu0 0.0
        %438 = vmatprep.subr.mxu0 0.0
        %439 = vmatpush1.msra.mxu0 0.0
        %440 = vmatprep.subr.mxu0 %v238
        %441 = vmatpush1.msra.mxu0 %v237
        %442 = vmatprep.subr.mxu0 %v230
        %443 = vmatpush1.msra.mxu0 %v229
        %444 = vmatprep.subr.mxu0 %v222
        %445 = vmatpush1.msra.mxu0 %v221
        %446 = vmatprep.subr.mxu0 %v214
        %447 = vmatpush1.msra.mxu0 %v213
        %448 = vmatprep.subr.mxu0 0.0
        %449 = vmatpush2.msra.mxu0 0.0
        %450 = vmatprep.subr.mxu0 0.0
        %451 = vmatpush2.msra.mxu0 0.0
        %452 = vmatprep.subr.mxu0 0.0
        %453 = vmatpush2.msra.mxu0 0.0
        %454 = vmatprep.subr.mxu0 0.0
        %455 = vmatpush2.msra.mxu0 0.0
        %456 = vmatprep.subr.mxu0 0.0
        %457 = vmatpush2.msra.mxu0 0.0
        %458 = vmatprep.subr.mxu0 0.0
        %459 = vmatpush2.msra.mxu0 0.0
        %460 = vmatprep.subr.mxu0 0.0
        %461 = vmatpush2.msra.mxu0 0.0
        %462 = vmatprep.subr.mxu0 0.0
        %463 = vmatpush2.msra.mxu0 0.0
        %464 = vmatprep.subr.mxu0 0.0
        %465 = vmatpush2.msra.mxu0 0.0
        %466 = vmatprep.subr.mxu0 0.0
        %467 = vmatpush2.msra.mxu0 0.0
        %468 = vmatprep.subr.mxu0 0.0
        %469 = vmatpush2.msra.mxu0 0.0
        %470 = vmatprep.subr.mxu0 0.0
        %471 = vmatpush2.msra.mxu0 0.0
        %472 = vmatprep.subr.mxu0 0.0
        %473 = vmatpush2.msra.mxu0 0.0
        %474 = vmatprep.subr.mxu0 0.0
        %475 = vmatpush2.msra.mxu0 0.0
        %476 = vmatprep.subr.mxu0 0.0
        %477 = vmatpush2.msra.mxu0 0.0
        %478 = vmatprep.subr.mxu0 0.0
        %479 = vmatpush2.msra.mxu0 0.0
        %480 = vmatprep.mubr.f32.mxu0 0.0
        %481 = vmatmul.mubr.f32.gmra.mxu0 %v257
        %v482 = vpop.f32.mrf.mxu0
        %v483 = vadd.f32 %v248, %v482
        %v484 = vpop.f32.mrf.mxu0
        %v485 = vadd.f32 %v248, %v484
        %486 = vmatprep.mubr.f32.mxu0 0.0
        %487 = vmatmul.mubr.f32.gmra.mxu0 %v260
        %v488 = vpop.f32.mrf.mxu0
        %v489 = vadd.f32 %v253, %v488
        %v490 = vpop.f32.mrf.mxu0
        %v491 = vadd.f32 %v253, %v490
        %492 = vdwg.mxu0
        %493 = vmatprep.subr.mxu0 0.0
        %494 = vmatpush1.msra.mxu0 0.0
        %495 = vmatprep.subr.mxu0 0.0
        %496 = vmatpush1.msra.mxu0 0.0
        %497 = vmatprep.subr.mxu0 0.0
        %498 = vmatpush1.msra.mxu0 0.0
        %499 = vmatprep.subr.mxu0 0.0
        %500 = vmatpush1.msra.mxu0 0.0
        %501 = vmatprep.subr.mxu0 0.0
        %502 = vmatpush1.msra.mxu0 0.0
        %503 = vmatprep.subr.mxu0 0.0
        %504 = vmatpush1.msra.mxu0 0.0
        %505 = vmatprep.subr.mxu0 0.0
        %506 = vmatpush1.msra.mxu0 0.0
        %507 = vmatprep.subr.mxu0 0.0
        %508 = vmatpush1.msra.mxu0 0.0
        %509 = vmatprep.subr.mxu0 0.0
        %510 = vmatpush1.msra.mxu0 0.0
        %511 = vmatprep.subr.mxu0 0.0
        %512 = vmatpush1.msra.mxu0 0.0
        %513 = vmatprep.subr.mxu0 0.0
        %514 = vmatpush1.msra.mxu0 0.0
        %515 = vmatprep.subr.mxu0 0.0
        %516 = vmatpush1.msra.mxu0 0.0
        %517 = vmatprep.subr.mxu0 %v240
        %518 = vmatpush1.msra.mxu0 %v239
        %519 = vmatprep.subr.mxu0 %v232
        %520 = vmatpush1.msra.mxu0 %v231
        %521 = vmatprep.subr.mxu0 %v224
        %522 = vmatpush1.msra.mxu0 %v223
        %523 = vmatprep.subr.mxu0 %v216
        %524 = vmatpush1.msra.mxu0 %v215
        %525 = vmatprep.subr.mxu0 0.0
        %526 = vmatpush2.msra.mxu0 0.0
        %527 = vmatprep.subr.mxu0 0.0
        %528 = vmatpush2.msra.mxu0 0.0
        %529 = vmatprep.subr.mxu0 0.0
        %530 = vmatpush2.msra.mxu0 0.0
        %531 = vmatprep.subr.mxu0 0.0
        %532 = vmatpush2.msra.mxu0 0.0
        %533 = vmatprep.subr.mxu0 0.0
        %534 = vmatpush2.msra.mxu0 0.0
        %535 = vmatprep.subr.mxu0 0.0
        %536 = vmatpush2.msra.mxu0 0.0
        %537 = vmatprep.subr.mxu0 0.0
        %538 = vmatpush2.msra.mxu0 0.0
        %539 = vmatprep.subr.mxu0 0.0
        %540 = vmatpush2.msra.mxu0 0.0
        %541 = vmatprep.subr.mxu0 0.0
        %542 = vmatpush2.msra.mxu0 0.0
        %543 = vmatprep.subr.mxu0 0.0
        %544 = vmatpush2.msra.mxu0 0.0
        %545 = vmatprep.subr.mxu0 0.0
        %546 = vmatpush2.msra.mxu0 0.0
        %547 = vmatprep.subr.mxu0 0.0
        %548 = vmatpush2.msra.mxu0 0.0
        %549 = vmatprep.subr.mxu0 0.0
        %550 = vmatpush2.msra.mxu0 0.0
        %551 = vmatprep.subr.mxu0 0.0
        %552 = vmatpush2.msra.mxu0 0.0
        %553 = vmatprep.subr.mxu0 0.0
        %554 = vmatpush2.msra.mxu0 0.0
        %555 = vmatprep.subr.mxu0 0.0
        %556 = vmatpush2.msra.mxu0 0.0
        %557 = vmatprep.mubr.f32.mxu0 0.0
        %558 = vmatmul.mubr.f32.gmra.mxu0 %v257
        %v559 = vpop.f32.mrf.mxu0
        %v560 = vadd.f32 %v248, %v559
        %v561 = vpop.f32.mrf.mxu0
        %v562 = vadd.f32 %v248, %v561
        %563 = vmatprep.mubr.f32.mxu0 0.0
        %564 = vmatmul.mubr.f32.gmra.mxu0 %v260
        %v565 = vpop.f32.mrf.mxu0
        %v566 = vadd.f32 %v253, %v565
        %v567 = vpop.f32.mrf.mxu0
        %v568 = vadd.f32 %v253, %v567
        %569 = vdwg.mxu0
        %v570 = vlaneseq
        %v571 = vand.u32 %v570, 127
        %v572 = vadd.s32 %v571, 128
        %v573 = vadd.s32 %v571, 256
        %v574 = vadd.s32 %v571, 384
        %v575 = vadd.s32 %v571, 512
        %v576 = vadd.s32 %v571, 640
        %v577 = vadd.s32 %v571, 768
        %v578 = vadd.s32 %v571, 896
        %vm579 = vcmp.lt.s32.totalorder %v571, 0
        %v580 = vsub.s32 0, %v571
        %v581 = vsel %vm579, %v580, %v571
        %v582 = vshrl.u32 %v581, 7
        %v583 = vand.u32 %v581, 127
        %v584 = vsub.s32 0, %v583
        %v585 = vsel %vm579, %v584, %v583
        %vm586 = vcmp.lt.s32.totalorder %v572, 0
        %v587 = vsub.s32 0, %v572
        %v588 = vsel %vm586, %v587, %v572
        %v589 = vshrl.u32 %v588, 7
        %v590 = vand.u32 %v588, 127
        %v591 = vsub.s32 0, %v590
        %v592 = vsel %vm586, %v591, %v590
        %vm593 = vcmp.lt.s32.totalorder %v573, 0
        %v594 = vsub.s32 0, %v573
        %v595 = vsel %vm593, %v594, %v573
        %v596 = vshrl.u32 %v595, 7
        %v597 = vand.u32 %v595, 127
        %v598 = vsub.s32 0, %v597
        %v599 = vsel %vm593, %v598, %v597
        %vm600 = vcmp.lt.s32.totalorder %v574, 0
        %v601 = vsub.s32 0, %v574
        %v602 = vsel %vm600, %v601, %v574
        %v603 = vshrl.u32 %v602, 7
        %v604 = vand.u32 %v602, 127
        %v605 = vsub.s32 0, %v604
        %v606 = vsel %vm600, %v605, %v604
        %vm607 = vcmp.lt.s32.totalorder %v575, 0
        %v608 = vsub.s32 0, %v575
        %v609 = vsel %vm607, %v608, %v575
        %v610 = vshrl.u32 %v609, 7
        %v611 = vand.u32 %v609, 127
        %v612 = vsub.s32 0, %v611
        %v613 = vsel %vm607, %v612, %v611
        %vm614 = vcmp.lt.s32.totalorder %v576, 0
        %v615 = vsub.s32 0, %v576
        %v616 = vsel %vm614, %v615, %v576
        %v617 = vshrl.u32 %v616, 7
        %v618 = vand.u32 %v616, 127
        %v619 = vsub.s32 0, %v618
        %v620 = vsel %vm614, %v619, %v618
        %vm621 = vcmp.lt.s32.totalorder %v577, 0
        %v622 = vsub.s32 0, %v577
        %v623 = vsel %vm621, %v622, %v577
        %v624 = vshrl.u32 %v623, 7
        %v625 = vand.u32 %v623, 127
        %v626 = vsub.s32 0, %v625
        %v627 = vsel %vm621, %v626, %v625
        %vm628 = vcmp.lt.s32.totalorder %v578, 0
        %v629 = vsub.s32 0, %v578
        %v630 = vsel %vm628, %v629, %v578
        %v631 = vshrl.u32 %v630, 7
        %v632 = vand.u32 %v630, 127
        %v633 = vsub.s32 0, %v632
        %v634 = vsel %vm628, %v633, %v632
        %vm635 = vcmp.ne.s32.totalorder %v585, 0
        %vm636 = vcmp.ne.s32.totalorder %v592, 0
        %vm637 = vcmp.ne.s32.totalorder %v599, 0
        %vm638 = vcmp.ne.s32.totalorder %v606, 0
        %vm639 = vcmp.ne.s32.totalorder %v613, 0
        %vm640 = vcmp.ne.s32.totalorder %v620, 0
        %vm641 = vcmp.ne.s32.totalorder %v627, 0
        %vm642 = vcmp.ne.s32.totalorder %v634, 0
        %vm643 = vcmp.lt.s32.totalorder %v585, 0
        %vm644 = vcmp.lt.s32.totalorder %v592, 0
        %vm645 = vcmp.lt.s32.totalorder %v599, 0
        %vm646 = vcmp.lt.s32.totalorder %v606, 0
        %vm647 = vcmp.lt.s32.totalorder %v613, 0
        %vm648 = vcmp.lt.s32.totalorder %v620, 0
        %vm649 = vcmp.lt.s32.totalorder %v627, 0
        %vm650 = vcmp.lt.s32.totalorder %v634, 0
        %vm651 = vmand %vm643, %vm635
        %vm652 = vmand %vm644, %vm636
        %vm653 = vmand %vm645, %vm637
        %vm654 = vmand %vm646, %vm638
        %vm655 = vmand %vm647, %vm639
        %vm656 = vmand %vm648, %vm640
        %vm657 = vmand %vm649, %vm641
        %vm658 = vmand %vm650, %vm642
        %v659 = vadd.s32 %v585, 128
        %v660 = vadd.s32 %v592, 128
        %v661 = vadd.s32 %v599, 128
        %v662 = vadd.s32 %v606, 128
        %v663 = vadd.s32 %v613, 128
        %v664 = vadd.s32 %v620, 128
        %v665 = vadd.s32 %v627, 128
        %v666 = vadd.s32 %v634, 128
        %v667 = vsel %vm651, %v659, %v585
        %v668 = vsel %vm652, %v660, %v592
        %v669 = vsel %vm653, %v661, %v599
        %v670 = vsel %vm654, %v662, %v606
        %v671 = vsel %vm655, %v663, %v613
        %v672 = vsel %vm656, %v664, %v620
        %v673 = vsel %vm657, %v665, %v627
        %v674 = vsel %vm658, %v666, %v634
        %vm675 = vcmp.ge.s32.totalorder %v667, 1
        %vm676 = vcmp.ge.s32.totalorder %v668, 1
        %vm677 = vcmp.ge.s32.totalorder %v669, 1
        %vm678 = vcmp.ge.s32.totalorder %v670, 1
        %vm679 = vcmp.ge.s32.totalorder %v671, 1
        %vm680 = vcmp.ge.s32.totalorder %v672, 1
        %vm681 = vcmp.ge.s32.totalorder %v673, 1
        %vm682 = vcmp.ge.s32.totalorder %v674, 1
        %vm683 = vcmp.le.s32.totalorder %v667, 8
        %vm684 = vcmp.le.s32.totalorder %v668, 8
        %vm685 = vcmp.le.s32.totalorder %v669, 8
        %vm686 = vcmp.le.s32.totalorder %v670, 8
        %vm687 = vcmp.le.s32.totalorder %v671, 8
        %vm688 = vcmp.le.s32.totalorder %v672, 8
        %vm689 = vcmp.le.s32.totalorder %v673, 8
        %vm690 = vcmp.le.s32.totalorder %v674, 8
        %vm691 = vmand %vm675, %vm683
        %vm692 = vmand %vm676, %vm684
        %vm693 = vmand %vm677, %vm685
        %vm694 = vmand %vm678, %vm686
        %vm695 = vmand %vm679, %vm687
        %vm696 = vmand %vm680, %vm688
        %vm697 = vmand %vm681, %vm689
        %vm698 = vmand %vm682, %vm690
        %v699 = vsel %vm691, 1, 0
        %v700 = vsel %vm692, 1, 0
        %v701 = vsel %vm693, 1, 0
        %v702 = vsel %vm694, 1, 0
        %v703 = vsel %vm695, 1, 0
        %v704 = vsel %vm696, 1, 0
        %v705 = vsel %vm697, 1, 0
        %v706 = vsel %vm698, 1, 0
        %vm707 = vcmp.eq.s32.totalorder %v699, 1
        %vm708 = vcmp.eq.s32.totalorder %v700, 1
        %vm709 = vcmp.eq.s32.totalorder %v701, 1
        %vm710 = vcmp.eq.s32.totalorder %v702, 1
        %vm711 = vcmp.eq.s32.totalorder %v703, 1
        %vm712 = vcmp.eq.s32.totalorder %v704, 1
        %vm713 = vcmp.eq.s32.totalorder %v705, 1
        %vm714 = vcmp.eq.s32.totalorder %v706, 1
        %v715 = vsel %vm707, %v329, 0.0
        %v716 = vsel %vm708, %v331, 0.0
        %v717 = vsel %vm709, %v406, 0.0
        %v718 = vsel %vm710, %v408, 0.0
        %v719 = vsel %vm711, %v483, 0.0
        %v720 = vsel %vm712, %v485, 0.0
        %v721 = vsel %vm713, %v560, 0.0
        %v722 = vsel %vm714, %v562, 0.0
        %v723 = vsel %vm707, %v335, 0.0
        %v724 = vsel %vm708, %v337, 0.0
        %v725 = vsel %vm709, %v412, 0.0
        %v726 = vsel %vm710, %v414, 0.0
        %v727 = vsel %vm711, %v489, 0.0
        %v728 = vsel %vm712, %v491, 0.0
        %v729 = vsel %vm713, %v566, 0.0
        %v730 = vsel %vm714, %v568, 0.0
        %731 = vst [vmem:[%s206] sm:$0xff] %v715
        %732 = vst [vmem:[%s206 + $0x8] sm:$0xff] %v716
        %733 = vst [vmem:[%s206 + $0x10] sm:$0xff] %v717
        %734 = vst [vmem:[%s206 + $0x18] sm:$0xff] %v718
        %735 = vst [vmem:[%s206 + $0x20] sm:$0xff] %v719
        %736 = vst [vmem:[%s206 + $0x28] sm:$0xff] %v720
        %737 = vst [vmem:[%s206 + $0x30] sm:$0xff] %v721
        %738 = vst [vmem:[%s206 + $0x38] sm:$0xff] %v722
        %739 = vst [vmem:[%s206 + $0x40] sm:$0xff] %v723
        %740 = vst [vmem:[%s206 + $0x48] sm:$0xff] %v724
        %741 = vst [vmem:[%s206 + $0x50] sm:$0xff] %v725
        %742 = vst [vmem:[%s206 + $0x58] sm:$0xff] %v726
        %743 = vst [vmem:[%s206 + $0x60] sm:$0xff] %v727
        %744 = vst [vmem:[%s206 + $0x68] sm:$0xff] %v728
        %745 = vst [vmem:[%s206 + $0x70] sm:$0xff] %v729
        %746 = vst [vmem:[%s206 + $0x78] sm:$0xff] %v730
        %s747 = sand.u32 %s112, 1
        %s748 = scalar_lea.sflag [#allocation4], %s747
        %s749 = sand.u32 %s112, 1
        %s750 = smul.addr %s749, 128
        %s751 = scalar_lea.vmem [#allocation5], %s750
        // Predicated region
        $region37: #{tpu_custom_call.1} parent=31 // pred_check
          %p752 = pneg %p122
        $region38: #{tpu_custom_call.1} parent=31 // pred_check_branch
          %754 = sbr.rel (%p752) target = $region40
        $region39: #{tpu_custom_call.1} parent=31 // pred_region
          %s755 = smul.u32 8, %s25
          %s757 = ssub.s32 2048, 2048
          %758 = vsyncadd %s748, %s757
          %s759 = smul.addr %s24, 16
          %s760 = sadd.s32 %s755, %s759
          %s761 = smul.addr %s760, 128
          %s762 = scalar_lea.hbm %s3, %s761
          %s763 = sshll.u32 %s751, 4
          %s764 = int_to_ptr.vmem [resolvable:$true] %s763
          %769 = dma.vmem_to_hbm [thread:$0]  %s764, 2048, %s762, %s748, 1024, 1024, 64
        $region40: #{tpu_custom_call.1} parent=31 // pred_fallthru
          _
      $region32: #{tpu_custom_call.1} parent=5 // pred_fallthru
        _
      %p770 = scmp.le.s32.totalorder 2, %s15
      // Predicated region
      $region41: #{tpu_custom_call.1} parent=5 // pred_check
        %p771 = pneg %p770
      $region42: #{tpu_custom_call.1} parent=5 // pred_check_branch
        %773 = sbr.rel (%p771) target = $region44
      $region43: #{tpu_custom_call.1} parent=5 // pred_region
        %s774 = ssub.s32 %s15, 2
        // Predicated region
        $region45: #{tpu_custom_call.1} parent=43 // pred_check
          %p775 = pneg %p128
        $region46: #{tpu_custom_call.1} parent=43 // pred_check_branch
          %777 = sbr.rel (%p775) target = $region48
        $region47: #{tpu_custom_call.1} parent=43 // pred_region
          %s778 = sand.u32 %s113, 1
          %s779 = scalar_lea.sflag [#allocation4], %s778
          %s780 = sand.u32 %s113, 1
          %s781 = smul.addr %s780, 128
          %s782 = scalar_lea.vmem [#allocation5], %s781
          %783 = dma.done %s779, 2048
        $region48: #{tpu_custom_call.1} parent=43 // pred_fallthru
          _
      $region44: #{tpu_custom_call.1} parent=5 // pred_fallthru
        _
    $region6: #{tpu_custom_call.1} parent=1 // loop_footer
      %s19 = sadd.s32 1, %s15
    $region7: #{tpu_custom_call.1} parent=1 // loop_footer_branch
      %14 = sbr.rel target = $region3
    $region8: #{tpu_custom_call.1} parent=1 // loop_exit
      _
    %784 = vsyncpa [#allocation3], 1
    %s785 = scalar_lea.sflag [#allocation3], 1
    %786 = vsyncpa %s785, 1
    %787 = vsyncpa [#allocation4], 1
    %s788 = scalar_lea.sflag [#allocation4], 1
    %789 = vsyncpa %s788, 1

</llo_original>
